<compile_context>
chip_gen: v6e
topology: v6e:2x2x1
jax: 0.10.0
libtpu: 0.0.40
codegen_flags: <defaults>
</compile_context>

<pallas_src>
import functools
from collections import namedtuple

import jax
import jax.numpy as jnp
from jax.experimental import pallas as pl
from jax.experimental.pallas import tpu as pltpu


# ------------------------------ helpers -------------------------------------

def _round_up(a, b):
    return (a + b - 1) // b * b


EncoderCfg = namedtuple(
    "EncoderCfg",
    ["Cin", "Cout", "kH", "kW", "sH", "sW", "pH", "pW",
     "Kp", "tk", "N2p", "eps", "slope"])


def _hw_config():
    """Trace-time hardware knobs (generation-dependent)."""
    try:
        kind = jax.devices()[0].device_kind.lower()
    except Exception:
        kind = ""
    is_v7 = "v7" in kind
    # v7x: 64 MiB physical VMEM -> keep scoped limit conservative.
    # v5e/v6e (and other gens): 128 MiB physical -> allow bigger tiles.
    vmem_limit = (48 if is_v7 else 64) * 1024 * 1024
    return is_v7, vmem_limit


# ----------------------------- Pallas kernels -------------------------------

def _gemm_stats_kernel(w_ref, x_ref, y_ref, st_ref, acc_ref):
    """Complex conv as one GEMM, channels on sublanes / spatial on lanes.

    w_ref  : (N2p, tk)  bf16  complex weight block (constant across spatial axis)
    x_ref  : (tk,  tm)  bf16  im2col patch block
    y_ref  : (N2p, tm)  bf16  conv output block (pre-BN), written at last k
    st_ref : (N2p, 128) f32   lane 0 = per-channel sum, lane 1 = sum of squares
    acc_ref: (N2p, tm)  f32   K-accumulator scratch
    """
    k = pl.program_id(1)

    @pl.when(k == 0)
    def _():
        acc_ref[...] = jnp.zeros_like(acc_ref)

    acc_ref[...] += jnp.dot(w_ref[...], x_ref[...],
                            preferred_element_type=jnp.float32)

    @pl.when(k == pl.num_programs(1) - 1)
    def _():
        acc = acc_ref[...]
        y_ref[...] = acc.astype(y_ref.dtype)
        # Per-channel partial BN statistics from the exact f32 accumulator
        # (padding columns/rows are zero and contribute nothing).
        s = jnp.sum(acc, axis=1, keepdims=True)           # (N2p, 1)
        ss = jnp.sum(acc * acc, axis=1, keepdims=True)    # (N2p, 1)
        lane = jax.lax.broadcasted_iota(jnp.int32, st_ref.shape, 1)
        st_ref[...] = jnp.where(lane == 0, s, jnp.where(lane == 1, ss, 0.0))


def _bn_act_kernel(y_ref, sc_ref, sh_ref, o_ref, *, slope):
    """Fused affine batch-norm (precomputed scale/shift columns) + LeakyReLU."""
    z = y_ref[...].astype(jnp.float32) * sc_ref[...] + sh_ref[...]
    o_ref[...] = jnp.where(z >= 0, z, slope * z).astype(o_ref.dtype)


# --------------------------- parameter prep ---------------------------------

def prepare_encoder_params(params, stride, padding, *, eps=1e-5, slope=0.01,
                           mxu_dtype=jnp.bfloat16, tk_cap=2048):
    """Build the static (transposed) complex GEMM weight matrix + BN params."""
    Wr, Wi = params["Wr"], params["Wi"]              # (Cout, Cin, kH, kW)
    Cout, Cin, kH, kW = Wr.shape
    K0 = kH * kW * Cin
    wr = jnp.transpose(Wr, (2, 3, 1, 0)).reshape(K0, Cout)
    wi = jnp.transpose(Wi, (2, 3, 1, 0)).reshape(K0, Cout)
    top = jnp.concatenate([wr, wi], axis=1)          # multiplies Xr
    bot = jnp.concatenate([-wi, wr], axis=1)         # multiplies Xi
    wbig = jnp.concatenate([top, bot], axis=0)       # (2*K0, 2*Cout)
    wbig_t = wbig.T                                  # (2*Cout, 2*K0) rows=[re|im]

    K = 2 * K0
    N2 = 2 * Cout
    K128 = _round_up(K, 128)
    nK = -(-K128 // tk_cap)                          # K grid axis (v7x VMEM)
    tk = _round_up(-(-K128 // nK), 128)
    Kp = tk * nK
    N2p = _round_up(N2, 16)                          # bf16 sublane packing

    wbig_t = jnp.pad(wbig_t, ((0, N2p - N2), (0, Kp - K))).astype(mxu_dtype)

    # NOTE: conv biases br/bi are intentionally unused; a per-channel constant
    # before train-mode BN is cancelled by the batch-mean subtraction.
    gamma = jnp.concatenate([params["gamma_r"], params["gamma_i"]]).astype(jnp.float32)
    beta = jnp.concatenate([params["beta_r"], params["beta_i"]]).astype(jnp.float32)
    gamma = jnp.pad(gamma, (0, N2p - N2)).reshape(N2p, 1)
    beta = jnp.pad(beta, (0, N2p - N2)).reshape(N2p, 1)

    cfg = EncoderCfg(Cin=Cin, Cout=Cout, kH=kH, kW=kW,
                     sH=stride[0], sW=stride[1], pH=padding[0], pW=padding[1],
                     Kp=Kp, tk=tk, N2p=N2p, eps=eps, slope=slope)
    return wbig_t, gamma, beta, cfg


# ------------------------------ forward pass ---------------------------------

def _im2col_blocks(xhwc, kH, kW, sH, sW, pH, pW, Hout, Wout):
    """(B,H,W,C) -> list of (C, B*Hout*Wout) blocks, one per (kh, kw) tap."""
    C = xhwc.shape[-1]
    xp = jnp.pad(xhwc, ((0, 0), (pH, pH), (pW, pW), (0, 0)))
    blocks = []
    for kh in range(kH):
        for kw in range(kW):
            sl = xp[:, kh:kh + sH * Hout:sH, kw:kw + sW * Wout:sW, :]
            blocks.append(jnp.transpose(sl, (3, 0, 1, 2)).reshape(C, -1))
    return blocks


@functools.partial(jax.jit, static_argnames=("cfg",))
def encoder_forward(x, wbig_t, gamma, beta, *, cfg):
    """x: (B, Cin, H, W, 2) f32  ->  (B, Cout, Hout, Wout, 2) f32."""
    B, Cin, H, W, _ = x.shape
    Hout = (H + 2 * cfg.pH - cfg.kH) // cfg.sH + 1
    Wout = (W + 2 * cfg.pW - cfg.kW) // cfg.sW + 1
    M = B * Hout * Wout
    N2p, Kp, tk = cfg.N2p, cfg.Kp, cfg.tk
    nK = Kp // tk

    is_v7, vmem_limit = _hw_config()

    # Spatial (lane) tile.  On v7x (2 TensorCores) keep >= 2 parallel grid
    # steps when M allows; on single-TC chips use one big tile (no clamp).
    tm = min(2048, _round_up(M, 128))
    if is_v7:
        tm = min(tm, max(128, _round_up(-(-M // 2), 128)))
    Mp = _round_up(M, tm)
    nM = Mp // tm

    # ---- im2col glue (bf16; K on sublanes, spatial on lanes) ---------------
    xb = x.astype(wbig_t.dtype)
    xr = jnp.transpose(xb[..., 0], (0, 2, 3, 1))     # (B,H,W,Cin)
    xi = jnp.transpose(xb[..., 1], (0, 2, 3, 1))
    blocks = (_im2col_blocks(xr, cfg.kH, cfg.kW, cfg.sH, cfg.sW,
                             cfg.pH, cfg.pW, Hout, Wout)
              + _im2col_blocks(xi, cfg.kH, cfg.kW, cfg.sH, cfg.sW,
                               cfg.pH, cfg.pW, Hout, Wout))
    xt = jnp.concatenate(blocks, axis=0)             # (2*kH*kW*Cin, M) bf16
    xt = jnp.pad(xt, ((0, Kp - xt.shape[0]), (0, Mp - M)))

    # ---- Pallas kernel 1: complex conv GEMM + partial BN stats -------------
    y2d, stats = pl.pallas_call(
        _gemm_stats_kernel,
        out_shape=(jax.ShapeDtypeStruct((N2p, Mp), xt.dtype),
                   jax.ShapeDtypeStruct((nM * N2p, 128), jnp.float32)),
        grid_spec=pltpu.PrefetchScalarGridSpec(
            num_scalar_prefetch=0,
            grid=(nM, nK),
            in_specs=[
                pl.BlockSpec((N2p, tk), lambda i, k: (0, k)),   # weights
                pl.BlockSpec((tk, tm), lambda i, k: (k, i)),    # patches
            ],
            out_specs=[
                pl.BlockSpec((N2p, tm), lambda i, k: (0, i)),   # conv output
                pl.BlockSpec((N2p, 128), lambda i, k: (i, 0)),  # stats
            ],
            scratch_shapes=[pltpu.VMEM((N2p, tm), jnp.float32)]),
        compiler_params=pltpu.CompilerParams(
            dimension_semantics=("parallel", "arbitrary"),
            vmem_limit_bytes=vmem_limit),
        cost_estimate=pl.CostEstimate(
            flops=2 * N2p * Kp * Mp,
            transcendentals=0,
            bytes_accessed=nM * N2p * Kp * 2 + Kp * Mp * 2
            + N2p * Mp * 2 + nM * N2p * 128 * 4),
    )(wbig_t, xt)

    # ---- finalize batch statistics (tiny XLA reduce over nM tiles) ---------
    # TODO(synk): BN running-stat buffer updates / momentum are not modeled;
    # this is the train-mode (batch statistics) normalization path.
    stats = stats.reshape(nM, N2p, 128)
    tot = jnp.sum(stats[:, :, 0], axis=0).reshape(N2p, 1)
    totsq = jnp.sum(stats[:, :, 1], axis=0).reshape(N2p, 1)
    mean = tot / M
    var = jnp.maximum(totsq / M - mean * mean, 0.0)  # biased var (PyTorch BN)
    scale = gamma * jax.lax.rsqrt(var + cfg.eps)     # (N2p, 1)
    shift = beta - mean * scale                      # (N2p, 1)

    # ---- Pallas kernel 2: fused BN apply + LeakyReLU (bf16, in-place) ------
    # Fuse several GEMM tiles per elementwise step (amortize per-step
    # overhead) while keeping the per-block VMEM footprint ~2 MiB.
    limit_f = max(1, (2 * 1024 * 1024) // (N2p * 2 * tm))
    limit_f = min(limit_f, nM)
    if is_v7 and nM >= 2:
        limit_f = min(limit_f, nM // 2)
    f = 1
    for cand in range(limit_f, 0, -1):
        if nM % cand == 0:
            f = cand
            break
    tm2 = tm * f
    nM2 = nM // f

    out2d = pl.pallas_call(
        functools.partial(_bn_act_kernel, slope=cfg.slope),
        out_shape=jax.ShapeDtypeStruct((N2p, Mp), y2d.dtype),
        grid_spec=pltpu.PrefetchScalarGridSpec(
            num_scalar_prefetch=0,
            grid=(nM2,),
            in_specs=[
                pl.BlockSpec((N2p, tm2), lambda i: (0, i)),
                pl.BlockSpec((N2p, 1), lambda i: (0, 0)),
                pl.BlockSpec((N2p, 1), lambda i: (0, 0)),
            ],
            out_specs=pl.BlockSpec((N2p, tm2), lambda i: (0, i))),
        compiler_params=pltpu.CompilerParams(
            dimension_semantics=("parallel",),
            vmem_limit_bytes=vmem_limit),
        input_output_aliases={0: 0},                 # write back in place of y2d
        cost_estimate=pl.CostEstimate(
            flops=3 * N2p * Mp,
            transcendentals=0,
            bytes_accessed=2 * N2p * Mp * 2 + 2 * N2p * 4),
    )(y2d, scale, shift)

    # ---- final layout: (2*Cout, M) -> (B, Cout, Hout, Wout, 2) -------------
    # Transpose runs on bf16 data; cast to f32 only for the final output.
    # TODO(synk): ComplexActivation's isLast=True branch and the whitening
    # ComplexBatchNorm variant are external to the shown code; the
    # LeakyReLU-on-both-parts / per-part-BN path is implemented.
    y = out2d[:2 * cfg.Cout, :M].reshape(2, cfg.Cout, B, Hout, Wout)
    return jnp.transpose(y, (2, 1, 3, 4, 0)).astype(jnp.float32)


# ------------------------------ pure-JAX reference ---------------------------

def ref_encoder(x, params, stride, padding, eps=1e-5, slope=0.01):
    Wr, Wi = params["Wr"], params["Wi"]
    br, bi = params["br"], params["bi"]
    sH, sW = stride
    pH, pW = padding
    xr, xi = x[..., 0], x[..., 1]

    def conv(z, w):
        return jax.lax.conv_general_dilated(
            z, w, window_strides=(sH, sW), padding=[(pH, pH), (pW, pW)],
            dimension_numbers=("NCHW", "OIHW", "NCHW"))

    # complex_nn.ComplexConv2d: conv_re(w=Wr,b=br), conv_im(w=Wi,b=bi)
    real = conv(xr, Wr) - conv(xi, Wi) + (br - bi)[None, :, None, None]
    imag = conv(xi, Wr) + conv(xr, Wi) + (br + bi)[None, :, None, None]

    def bn_act(z, gamma, beta):
        mean = jnp.mean(z, axis=(0, 2, 3), keepdims=True)
        var = jnp.mean(jnp.square(z - mean), axis=(0, 2, 3), keepdims=True)
        zn = gamma[None, :, None, None] * (z - mean) * jax.lax.rsqrt(var + eps) \
            + beta[None, :, None, None]
        return jnp.where(zn >= 0, zn, slope * zn)

    real = bn_act(real, params["gamma_r"], params["beta_r"])
    imag = bn_act(imag, params["gamma_i"], params["beta_i"])
    return jnp.stack([real, imag], axis=-1)


# ---------------------------------- main -------------------------------------

if __name__ == "__main__":
    key = jax.random.PRNGKey(0)
    B, Cin, Cout = 2, 4, 8
    H, W = 32, 32
    kH, kW = 3, 3
    stride = (2, 2)
    padding = ((kH - 1) // 2, (kW - 1) // 2)   # module default padding

    ks = jax.random.split(key, 9)
    params = {
        "Wr": 0.1 * jax.random.normal(ks[0], (Cout, Cin, kH, kW), jnp.float32),
        "Wi": 0.1 * jax.random.normal(ks[1], (Cout, Cin, kH, kW), jnp.float32),
        "br": 0.1 * jax.random.normal(ks[2], (Cout,), jnp.float32),
        "bi": 0.1 * jax.random.normal(ks[3], (Cout,), jnp.float32),
        "gamma_r": 1.0 + 0.1 * jax.random.normal(ks[4], (Cout,), jnp.float32),
        "beta_r": 0.1 * jax.random.normal(ks[5], (Cout,), jnp.float32),
        "gamma_i": 1.0 + 0.1 * jax.random.normal(ks[6], (Cout,), jnp.float32),
        "beta_i": 0.1 * jax.random.normal(ks[7], (Cout,), jnp.float32),
    }
    x = jax.random.normal(ks[8], (B, Cin, H, W, 2), jnp.float32)

    wbig_t, gamma2, beta2, cfg = prepare_encoder_params(params, stride, padding)

    out = encoder_forward(x, wbig_t, gamma2, beta2, cfg=cfg)
    out = jax.block_until_ready(out)

    ref = jax.block_until_ready(ref_encoder(x, params, stride, padding))
    assert out.shape == ref.shape, (out.shape, ref.shape)
    # bf16 MXU inputs + bf16 activation storage (f32 accumulation & BN stats)
    # -> small numerical delta vs the f32 reference.
    err = float(jnp.max(jnp.abs(out - ref)))
    assert err < 5e-2, err

    print("KERNEL_OK")
</pallas_src>

<mosaic_0001>
module attributes {stable_mosaic.version = 11 : i64} {
  func.func @_gemm_stats_kernel(%arg0: i32, %arg1: i32, %arg2: memref<16x128xbf16, #tpu.memory_space<vmem>>, %arg3: memref<128x512xbf16, #tpu.memory_space<vmem>>, %arg4: memref<16x512xbf16, #tpu.memory_space<vmem>>, %arg5: memref<16x128xf32, #tpu.memory_space<vmem>>, %arg6: memref<16x512xf32, #tpu.memory_space<vmem>>) attributes {dimension_semantics = [#tpu.dimension_semantics<parallel>, #tpu.dimension_semantics<arbitrary>], iteration_bounds = array<i64: 1, 1>, scalar_prefetch = 0 : i64, scratch_operands = 1 : i64, tpu.core_type = #tpu.core_type<tc>, window_params = [{transform_indices = @transform_0, window_bounds = array<i64: 16, 128>}, {transform_indices = @transform_1, window_bounds = array<i64: 128, 512>}, {transform_indices = @transform_2, window_bounds = array<i64: 16, 512>}, {transform_indices = @transform_3, window_bounds = array<i64: 16, 128>}]} {
    %c0_i32 = arith.constant 0 : i32
    %0 = arith.cmpi eq, %arg1, %c0_i32 : i32
    %1 = arith.extui %0 : i1 to i32
    %c0_i32_0 = arith.constant 0 : i32
    %2 = arith.cmpi ne, %1, %c0_i32_0 : i32
    scf.if %2 {
      %cst_10 = arith.constant 0.000000e+00 : f32
      %12 = vector.broadcast %cst_10 : f32 to vector<16x512xf32>
      %c0_11 = arith.constant 0 : index
      %c0_12 = arith.constant 0 : index
      %13 = vector.load %arg6[%c0_11, %c0_12] : memref<16x512xf32, #tpu.memory_space<vmem>>, vector<16x512xf32>
      tpu.vector_store %arg6[%c0_11, %c0_12], %12 {strides = array<i32>} : memref<16x512xf32, #tpu.memory_space<vmem>>, vector<16x512xf32>,
    } else {
    }
    %c0 = arith.constant 0 : index
    %c0_1 = arith.constant 0 : index
    %3 = vector.load %arg6[%c0, %c0_1] : memref<16x512xf32, #tpu.memory_space<vmem>>, vector<16x512xf32>
    %c0_2 = arith.constant 0 : index
    %c0_3 = arith.constant 0 : index
    %4 = vector.load %arg2[%c0_2, %c0_3] : memref<16x128xbf16, #tpu.memory_space<vmem>>, vector<16x128xbf16>
    %c0_4 = arith.constant 0 : index
    %c0_5 = arith.constant 0 : index
    %5 = vector.load %arg3[%c0_4, %c0_5] : memref<128x512xbf16, #tpu.memory_space<vmem>>, vector<128x512xbf16>
    %cst = arith.constant dense<0.000000e+00> : vector<16x512xf32>
    %6 = tpu.matmul %4, %5, %cst {dimension_numbers = #tpu.dot_dimension_numbers<[1], [0], [0], [1], [0, 0, 1, 1], [], []>} : vector<16x128xbf16>, vector<128x512xbf16>, vector<16x512xf32> -> vector<16x512xf32>
    %7 = arith.addf %3, %6 : vector<16x512xf32>
    %c0_6 = arith.constant 0 : index
    %c0_7 = arith.constant 0 : index
    %8 = vector.load %arg6[%c0_6, %c0_7] : memref<16x512xf32, #tpu.memory_space<vmem>>, vector<16x512xf32>
    tpu.vector_store %arg6[%c0_6, %c0_7], %7 {strides = array<i32>} : memref<16x512xf32, #tpu.memory_space<vmem>>, vector<16x512xf32>,
    %c0_i32_8 = arith.constant 0 : i32
    %9 = arith.cmpi eq, %arg1, %c0_i32_8 : i32
    %10 = arith.extui %9 : i1 to i32
    %c0_i32_9 = arith.constant 0 : i32
    %11 = arith.cmpi ne, %10, %c0_i32_9 : i32
    scf.if %11 {
      %c0_10 = arith.constant 0 : index
      %c0_11 = arith.constant 0 : index
      %12 = vector.load %arg6[%c0_10, %c0_11] : memref<16x512xf32, #tpu.memory_space<vmem>>, vector<16x512xf32>
      %13 = arith.truncf %12 : vector<16x512xf32> to vector<16x512xbf16>
      %c0_12 = arith.constant 0 : index
      %c0_13 = arith.constant 0 : index
      %14 = vector.load %arg4[%c0_12, %c0_13] : memref<16x512xbf16, #tpu.memory_space<vmem>>, vector<16x512xbf16>
      tpu.vector_store %arg4[%c0_12, %c0_13], %13 {strides = array<i32>} : memref<16x512xbf16, #tpu.memory_space<vmem>>, vector<16x512xbf16>,
      %cst_14 = arith.constant dense<0.000000e+00> : vector<16xf32>
      %15 = vector.multi_reduction <add>, %12, %cst_14 [1] : vector<16x512xf32> to vector<16xf32>
      %16 = vector.shape_cast %15 : vector<16xf32> to vector<16x1xf32>
      %17 = arith.mulf %12, %12 : vector<16x512xf32>
      %cst_15 = arith.constant dense<0.000000e+00> : vector<16xf32>
      %18 = vector.multi_reduction <add>, %17, %cst_15 [1] : vector<16x512xf32> to vector<16xf32>
      %19 = vector.shape_cast %18 : vector<16xf32> to vector<16x1xf32>
      %20 = tpu.iota {dimensions = array<i32: 1>} : vector<16x128xi32>
      %c0_i32_16 = arith.constant 0 : i32
      %21 = vector.broadcast %c0_i32_16 : i32 to vector<16x128xi32>
      %22 = arith.cmpi eq, %20, %21 : vector<16x128xi32>
      %c1_i32 = arith.constant 1 : i32
      %23 = vector.broadcast %c1_i32 : i32 to vector<16x128xi32>
      %24 = arith.cmpi eq, %20, %23 : vector<16x128xi32>
      %cst_17 = arith.constant 0.000000e+00 : f32
      %25 = vector.shape_cast %19 : vector<16x1xf32> to vector<16x1xf32>
      %26 = vector.broadcast %25 : vector<16x1xf32> to vector<16x128xf32>
      %27 = vector.broadcast %cst_17 : f32 to vector<16x128xf32>
      %28 = arith.select %24, %26, %27 : vector<16x128xi1>, vector<16x128xf32>
      %29 = vector.shape_cast %16 : vector<16x1xf32> to vector<16x1xf32>
      %30 = vector.broadcast %29 : vector<16x1xf32> to vector<16x128xf32>
      %31 = arith.select %22, %30, %28 : vector<16x128xi1>, vector<16x128xf32>
      %c0_18 = arith.constant 0 : index
      %c0_19 = arith.constant 0 : index
      %32 = vector.load %arg5[%c0_18, %c0_19] : memref<16x128xf32, #tpu.memory_space<vmem>>, vector<16x128xf32>
      tpu.vector_store %arg5[%c0_18, %c0_19], %31 {strides = array<i32>} : memref<16x128xf32, #tpu.memory_space<vmem>>, vector<16x128xf32>,
    } else {
    }
    return
  }
  func.func @transform_0(%arg0: i32, %arg1: i32) -> (i32, i32) {
    %c0_i32 = arith.constant 0 : i32
    %c0_i32_0 = arith.constant 0 : i32
    return %c0_i32, %arg1 : i32, i32
  }
  func.func @transform_1(%arg0: i32, %arg1: i32) -> (i32, i32) {
    %c0_i32 = arith.constant 0 : i32
    return %arg1, %arg0 : i32, i32
  }
  func.func @transform_2(%arg0: i32, %arg1: i32) -> (i32, i32) {
    %c0_i32 = arith.constant 0 : i32
    %c0_i32_0 = arith.constant 0 : i32
    return %c0_i32, %arg0 : i32, i32
  }
  func.func @transform_3(%arg0: i32, %arg1: i32) -> (i32, i32) {
    %c0_i32 = arith.constant 0 : i32
    %c0_i32_0 = arith.constant 0 : i32
    return %arg0, %c0_i32 : i32, i32
  }
}

module attributes {stable_mosaic.version = 11 : i64} {
  func.func @_bn_act_kernel(%arg0: i32, %arg1: memref<16x512xbf16, #tpu.memory_space<vmem>>, %arg2: memref<16x1xf32, #tpu.memory_space<vmem>>, %arg3: memref<16x1xf32, #tpu.memory_space<vmem>>, %arg4: memref<16x512xbf16, #tpu.memory_space<vmem>>) attributes {dimension_semantics = [#tpu.dimension_semantics<parallel>], iteration_bounds = array<i64: 1>, scalar_prefetch = 0 : i64, scratch_operands = 0 : i64, tpu.core_type = #tpu.core_type<tc>, window_params = [{transform_indices = @transform_0, window_bounds = array<i64: 16, 512>}, {pipeline_mode = #tpu.pipeline_mode<synchronous>, transform_indices = @transform_1, window_bounds = array<i64: 16, 1>}, {pipeline_mode = #tpu.pipeline_mode<synchronous>, transform_indices = @transform_2, window_bounds = array<i64: 16, 1>}, {transform_indices = @transform_3, window_bounds = array<i64: 16, 512>}]} {
    %c0 = arith.constant 0 : index
    %c0_0 = arith.constant 0 : index
    %0 = vector.load %arg1[%c0, %c0_0] : memref<16x512xbf16, #tpu.memory_space<vmem>>, vector<16x512xbf16>
    %1 = arith.extf %0 : vector<16x512xbf16> to vector<16x512xf32>
    %c0_1 = arith.constant 0 : index
    %c0_2 = arith.constant 0 : index
    %2 = vector.load %arg2[%c0_1, %c0_2] : memref<16x1xf32, #tpu.memory_space<vmem>>, vector<16x1xf32>
    %3 = vector.broadcast %2 : vector<16x1xf32> to vector<16x512xf32>
    %4 = arith.mulf %1, %3 : vector<16x512xf32>
    %c0_3 = arith.constant 0 : index
    %c0_4 = arith.constant 0 : index
    %5 = vector.load %arg3[%c0_3, %c0_4] : memref<16x1xf32, #tpu.memory_space<vmem>>, vector<16x1xf32>
    %6 = vector.broadcast %5 : vector<16x1xf32> to vector<16x512xf32>
    %7 = arith.addf %4, %6 : vector<16x512xf32>
    %cst = arith.constant 0.000000e+00 : f32
    %8 = vector.broadcast %cst : f32 to vector<16x512xf32>
    %9 = arith.cmpf oge, %7, %8 : vector<16x512xf32>
    %cst_5 = arith.constant 0.00999999977 : f32
    %10 = vector.broadcast %cst_5 : f32 to vector<16x512xf32>
    %11 = arith.mulf %10, %7 : vector<16x512xf32>
    %12 = arith.select %9, %7, %11 : vector<16x512xi1>, vector<16x512xf32>
    %13 = arith.truncf %12 : vector<16x512xf32> to vector<16x512xbf16>
    %c0_6 = arith.constant 0 : index
    %c0_7 = arith.constant 0 : index
    %14 = vector.load %arg4[%c0_6, %c0_7] : memref<16x512xbf16, #tpu.memory_space<vmem>>, vector<16x512xbf16>
    tpu.vector_store %arg4[%c0_6, %c0_7], %13 {strides = array<i32>} : memref<16x512xbf16, #tpu.memory_space<vmem>>, vector<16x512xbf16>,
    return
  }
  func.func @transform_0(%arg0: i32) -> (i32, i32) {
    %c0_i32 = arith.constant 0 : i32
    %c0_i32_0 = arith.constant 0 : i32
    return %c0_i32, %arg0 : i32, i32
  }
  func.func @transform_1(%arg0: i32) -> (i32, i32) {
    %c0_i32 = arith.constant 0 : i32
    %c0_i32_0 = arith.constant 0 : i32
    %c0_i32_1 = arith.constant 0 : i32
    return %c0_i32, %c0_i32_0 : i32, i32
  }
  func.func @transform_2(%arg0: i32) -> (i32, i32) {
    %c0_i32 = arith.constant 0 : i32
    %c0_i32_0 = arith.constant 0 : i32
    %c0_i32_1 = arith.constant 0 : i32
    return %c0_i32, %c0_i32_0 : i32, i32
  }
  func.func @transform_3(%arg0: i32) -> (i32, i32) {
    %c0_i32 = arith.constant 0 : i32
    %c0_i32_0 = arith.constant 0 : i32
    return %c0_i32, %arg0 : i32, i32
  }
}

</mosaic_0001>

<llo_original>
// kernel: encoder_forward.3
$region0: #{encoder_forward.3}
  #allocation0 [shape = 'u32[]', space=smem, size = 0x4, offset = 0x4, fixed_abs, tag = 'smem constant byte address 0x4 - core index']
  #allocation1 [shape = 'u32[144,128]{1,0:T(1,128)}', space=vmem, size = 0x12000, scoped, tag = 'internal scratch']
  %s0 = inlined_call_operand.vmem [shape: bf16[16,512], index: 0, kind: input, shape index: {}, may-alias: {0,3}]
  %s1 = inlined_call_operand.vmem [shape: f32[16,1], index: 1, kind: input, shape index: {}]
  %s2 = inlined_call_operand.vmem [shape: f32[16,1], index: 2, kind: input, shape index: {}]
  %s3 = inlined_call_operand.vmem [shape: bf16[16,512], index: 3, kind: output, shape index: {}, may-alias: {0,3}]
  %s4 = sld [smem:[#allocation0]]
  $region22: #{encoder_forward.3} parent=0
    _
  %s6 = ssub.s32 1, %s4
  %s7 = scalar_select 0, %s6, %s4
  // Predicated region
  $region2: #{encoder_forward.3} parent=0 // pred_check
    _
  $region3: #{encoder_forward.3} parent=0 // pred_check_branch
    %9 = sbr.rel (0) target = $region5
  $region4: #{encoder_forward.3} parent=0 // pred_region
    _
  $region5: #{encoder_forward.3} parent=0 // pred_fallthru
    _
  // Predicated region
  $region6: #{encoder_forward.3} parent=0 // pred_check
    _
  $region7: #{encoder_forward.3} parent=0 // pred_check_branch
    %11 = sbr.rel (0) target = $region9
  $region8: #{encoder_forward.3} parent=0 // pred_region
    _
  $region9: #{encoder_forward.3} parent=0 // pred_fallthru
    _
  // Predicated region
  $region10: #{encoder_forward.3} parent=0 // pred_check
    _
  $region11: #{encoder_forward.3} parent=0 // pred_check_branch
    %13 = sbr.rel (0) target = $region13
  $region12: #{encoder_forward.3} parent=0 // pred_region
    _
  $region13: #{encoder_forward.3} parent=0 // pred_fallthru
    _
  %v14 = vld [vmem:[%s0] sm:$0xff]
  %v15 = vld [vmem:[%s0 + $0x8] sm:$0xff]
  %v16 = vld [vmem:[%s0 + $0x10] sm:$0xff]
  %v17 = vld [vmem:[%s0 + $0x18] sm:$0xff]
  %v18 = vunpack.c.l.bf16 %v14
  %v19 = vunpack.c.h.bf16 %v14
  %v20 = vunpack.c.l.bf16 %v15
  %v21 = vunpack.c.h.bf16 %v15
  %v22 = vunpack.c.l.bf16 %v16
  %v23 = vunpack.c.h.bf16 %v16
  %v24 = vunpack.c.l.bf16 %v17
  %v25 = vunpack.c.h.bf16 %v17
  %v26 = vld [vmem:[%s1] sm:$0xff]
  %v27 = vld [vmem:[%s1 + $0x8] sm:$0xff]
  %29 = vset.pattern.permute.xlu0 0
  %30 = vperm.xlu0 %29, %v26
  %v31 = vpop.permute.xlu0 %30
  %34 = vset.pattern.permute.xlu0 0
  %35 = vperm.xlu0 %34, %v27
  %v36 = vpop.permute.xlu0 %35
  %v38 = vmul.f32 %v18, %v31
  %v39 = vmul.f32 %v19, %v31
  %v40 = vmul.f32 %v20, %v31
  %v41 = vmul.f32 %v21, %v31
  %v42 = vmul.f32 %v22, %v36
  %v43 = vmul.f32 %v23, %v36
  %v44 = vmul.f32 %v24, %v36
  %v45 = vmul.f32 %v25, %v36
  %v46 = vld [vmem:[%s2] sm:$0xff]
  %v47 = vld [vmem:[%s2 + $0x8] sm:$0xff]
  %49 = vset.pattern.permute.xlu0 0
  %50 = vperm.xlu0 %49, %v46
  %v51 = vpop.permute.xlu0 %50
  %54 = vset.pattern.permute.xlu0 0
  %55 = vperm.xlu0 %54, %v47
  %v56 = vpop.permute.xlu0 %55
  %v58 = vadd.f32 %v38, %v51
  %v59 = vadd.f32 %v39, %v51
  %v60 = vadd.f32 %v40, %v51
  %v61 = vadd.f32 %v41, %v51
  %v62 = vadd.f32 %v42, %v56
  %v63 = vadd.f32 %v43, %v56
  %v64 = vadd.f32 %v44, %v56
  %v65 = vadd.f32 %v45, %v56
  %vm66 = vcmp.ge.f32.partialorder %v58, 0.0
  %vm67 = vcmp.ge.f32.partialorder %v59, 0.0
  %vm68 = vcmp.ge.f32.partialorder %v60, 0.0
  %vm69 = vcmp.ge.f32.partialorder %v61, 0.0
  %vm70 = vcmp.ge.f32.partialorder %v62, 0.0
  %vm71 = vcmp.ge.f32.partialorder %v63, 0.0
  %vm72 = vcmp.ge.f32.partialorder %v64, 0.0
  %vm73 = vcmp.ge.f32.partialorder %v65, 0.0
  %v74 = vmul.f32 %v58, 0.01
  %v75 = vmul.f32 %v59, 0.01
  %v76 = vmul.f32 %v60, 0.01
  %v77 = vmul.f32 %v61, 0.01
  %v78 = vmul.f32 %v62, 0.01
  %v79 = vmul.f32 %v63, 0.01
  %v80 = vmul.f32 %v64, 0.01
  %v81 = vmul.f32 %v65, 0.01
  %v82 = vsel %vm66, %v58, %v74
  %v83 = vsel %vm67, %v59, %v75
  %v84 = vsel %vm68, %v60, %v76
  %v85 = vsel %vm69, %v61, %v77
  %v86 = vsel %vm70, %v62, %v78
  %v87 = vsel %vm71, %v63, %v79
  %v88 = vsel %vm72, %v64, %v80
  %v89 = vsel %vm73, %v65, %v81
  %v90 = vpack.c.bf16 %v86, %v82
  %v91 = vpack.c.bf16 %v87, %v83
  %v92 = vpack.c.bf16 %v88, %v84
  %v93 = vpack.c.bf16 %v89, %v85
  %v98 = vunpack.c.l.b16 %v90
  %v99 = vunpack.c.l.b16 %v91
  %v100 = vunpack.c.l.b16 %v92
  %v101 = vunpack.c.l.b16 %v93
  %v102 = vunpack.c.h.b16 %v90
  %v103 = vunpack.c.h.b16 %v91
  %v104 = vunpack.c.h.b16 %v92
  %v105 = vunpack.c.h.b16 %v93
  %v106 = vpack.c.b16 %v99, %v98
  %v107 = vpack.c.b16 %v101, %v100
  %v108 = vpack.c.b16 %v103, %v102
  %v109 = vpack.c.b16 %v105, %v104
  %114 = vst [vmem:[%s3] sm:$0xff] %v106
  %115 = vst [vmem:[%s3 + $0x8] sm:$0xff] %v107
  %116 = vst [vmem:[%s3 + $0x10] sm:$0xff] %v108
  %117 = vst [vmem:[%s3 + $0x18] sm:$0xff] %v109
  // Predicated region
  $region14: #{encoder_forward.3} parent=0 // pred_check
    _
  $region15: #{encoder_forward.3} parent=0 // pred_check_branch
    %119 = sbr.rel (0) target = $region17
  $region16: #{encoder_forward.3} parent=0 // pred_region
    _
  $region17: #{encoder_forward.3} parent=0 // pred_fallthru
    _
  // Predicated region
  $region18: #{encoder_forward.3} parent=0 // pred_check
    _
  $region19: #{encoder_forward.3} parent=0 // pred_check_branch
    %121 = sbr.rel (0) target = $region21
  $region20: #{encoder_forward.3} parent=0 // pred_region
    _
  $region21: #{encoder_forward.3} parent=0 // pred_fallthru
    _

// kernel: encoder_forward.2
$region0: #{encoder_forward.2}
  #allocation0 [shape = 'u32[]', space=smem, size = 0x4, offset = 0x4, fixed_abs, tag = 'smem constant byte address 0x4 - core index']
  #allocation1 [shape = 'u32[144,128]{1,0:T(1,128)}', space=vmem, size = 0x12000, scoped, tag = 'internal scratch']
  #allocation2 [shape = 'f32[16,512]{1,0:T(8,128)}', space=vmem, size = 0x8000, scoped, tag = 'scratch operand']
  %s0 = inlined_call_operand.vmem [shape: bf16[16,128], index: 0, kind: input, shape index: {}]
  %s1 = inlined_call_operand.vmem [shape: bf16[128,512], index: 1, kind: input, shape index: {}]
  %s2 = inlined_call_operand.vmem [shape: bf16[16,512], index: 2, kind: output, shape index: {0}]
  %s3 = inlined_call_operand.vmem [shape: f32[16,128], index: 3, kind: output, shape index: {1}]
  %4 = xla_tuple %s2, %s3
  %s5 = sld [smem:[#allocation0]]
  $region34: #{encoder_forward.2} parent=0
    _
  %s7 = ssub.s32 1, %s5
  %s8 = scalar_select 0, %s7, %s5
  // Predicated region
  $region2: #{encoder_forward.2} parent=0 // pred_check
    _
  $region3: #{encoder_forward.2} parent=0 // pred_check_branch
    %10 = sbr.rel (0) target = $region5
  $region4: #{encoder_forward.2} parent=0 // pred_region
    _
  $region5: #{encoder_forward.2} parent=0 // pred_fallthru
    _
  // Predicated region
  $region6: #{encoder_forward.2} parent=0 // pred_check
    _
  $region7: #{encoder_forward.2} parent=0 // pred_check_branch
    %12 = sbr.rel (0) target = $region9
  $region8: #{encoder_forward.2} parent=0 // pred_region
    _
  $region9: #{encoder_forward.2} parent=0 // pred_fallthru
    _
  %p14 = scmp.eq.s32.totalorder 0, 0
  // Predicated region
  $region10: #{encoder_forward.2} parent=0 // pred_check
    %p15 = pneg %p14
  $region11: #{encoder_forward.2} parent=0 // pred_check_branch
    %17 = sbr.rel (%p15) target = $region13
  $region12: #{encoder_forward.2} parent=0 // pred_region
    %18 = vst [vmem:[#allocation2] sm:$0xff] 0.0
    %19 = vst [vmem:[#allocation2 + $0x8] sm:$0xff] 0.0
    %20 = vst [vmem:[#allocation2 + $0x10] sm:$0xff] 0.0
    %21 = vst [vmem:[#allocation2 + $0x18] sm:$0xff] 0.0
    %22 = vst [vmem:[#allocation2 + $0x20] sm:$0xff] 0.0
    %23 = vst [vmem:[#allocation2 + $0x28] sm:$0xff] 0.0
    %24 = vst [vmem:[#allocation2 + $0x30] sm:$0xff] 0.0
    %25 = vst [vmem:[#allocation2 + $0x38] sm:$0xff] 0.0
  $region13: #{encoder_forward.2} parent=0 // pred_fallthru
    _
  %v26 = vld [vmem:[#allocation2] sm:$0xff]
  %v27 = vld [vmem:[#allocation2 + $0x8] sm:$0xff]
  %v28 = vld [vmem:[#allocation2 + $0x10] sm:$0xff]
  %v29 = vld [vmem:[#allocation2 + $0x18] sm:$0xff]
  %v30 = vld [vmem:[#allocation2 + $0x20] sm:$0xff]
  %v31 = vld [vmem:[#allocation2 + $0x28] sm:$0xff]
  %v32 = vld [vmem:[#allocation2 + $0x30] sm:$0xff]
  %v33 = vld [vmem:[#allocation2 + $0x38] sm:$0xff]
  %v34 = vld [vmem:[%s0] sm:$0xf]
  %v35 = vld [vmem:[%s0 + $0x4] sm:$0xf]
  %v36 = vld [vmem:[%s1] sm:$0xff]
  %v37 = vld [vmem:[%s1 + $0x8] sm:$0xff]
  %v38 = vld [vmem:[%s1 + $0x10] sm:$0xff]
  %v39 = vld [vmem:[%s1 + $0x18] sm:$0xff]
  %v40 = vld [vmem:[%s1 + $0x20] sm:$0xff]
  %v41 = vld [vmem:[%s1 + $0x28] sm:$0xff]
  %v42 = vld [vmem:[%s1 + $0x30] sm:$0xff]
  %v43 = vld [vmem:[%s1 + $0x38] sm:$0xff]
  %v44 = vld [vmem:[%s1 + $0x40] sm:$0xff]
  %v45 = vld [vmem:[%s1 + $0x48] sm:$0xff]
  %v46 = vld [vmem:[%s1 + $0x50] sm:$0xff]
  %v47 = vld [vmem:[%s1 + $0x58] sm:$0xff]
  %v48 = vld [vmem:[%s1 + $0x60] sm:$0xff]
  %v49 = vld [vmem:[%s1 + $0x68] sm:$0xff]
  %v50 = vld [vmem:[%s1 + $0x70] sm:$0xff]
  %v51 = vld [vmem:[%s1 + $0x78] sm:$0xff]
  %v52 = vld [vmem:[%s1 + $0x80] sm:$0xff]
  %v53 = vld [vmem:[%s1 + $0x88] sm:$0xff]
  %v54 = vld [vmem:[%s1 + $0x90] sm:$0xff]
  %v55 = vld [vmem:[%s1 + $0x98] sm:$0xff]
  %v56 = vld [vmem:[%s1 + $0xa0] sm:$0xff]
  %v57 = vld [vmem:[%s1 + $0xa8] sm:$0xff]
  %v58 = vld [vmem:[%s1 + $0xb0] sm:$0xff]
  %v59 = vld [vmem:[%s1 + $0xb8] sm:$0xff]
  %v60 = vld [vmem:[%s1 + $0xc0] sm:$0xff]
  %v61 = vld [vmem:[%s1 + $0xc8] sm:$0xff]
  %v62 = vld [vmem:[%s1 + $0xd0] sm:$0xff]
  %v63 = vld [vmem:[%s1 + $0xd8] sm:$0xff]
  %v64 = vld [vmem:[%s1 + $0xe0] sm:$0xff]
  %v65 = vld [vmem:[%s1 + $0xe8] sm:$0xff]
  %v66 = vld [vmem:[%s1 + $0xf0] sm:$0xff]
  %v67 = vld [vmem:[%s1 + $0xf8] sm:$0xff]
  %v70 = vunpack.c.l.b16 %v34
  %v71 = vunpack.c.l.b16 %v35
  %v72 = vpack.c.b16 %v71, %v70
  %v106 = vunpack.c.l.b16 %v36
  %v107 = vunpack.c.h.b16 %v36
  %v108 = vunpack.c.l.b16 %v37
  %v109 = vunpack.c.h.b16 %v37
  %v110 = vunpack.c.l.b16 %v38
  %v111 = vunpack.c.h.b16 %v38
  %v112 = vunpack.c.l.b16 %v39
  %v113 = vunpack.c.h.b16 %v39
  %v114 = vunpack.c.l.b16 %v40
  %v115 = vunpack.c.h.b16 %v40
  %v116 = vunpack.c.l.b16 %v41
  %v117 = vunpack.c.h.b16 %v41
  %v118 = vunpack.c.l.b16 %v42
  %v119 = vunpack.c.h.b16 %v42
  %v120 = vunpack.c.l.b16 %v43
  %v121 = vunpack.c.h.b16 %v43
  %v122 = vunpack.c.l.b16 %v44
  %v123 = vunpack.c.h.b16 %v44
  %v124 = vunpack.c.l.b16 %v45
  %v125 = vunpack.c.h.b16 %v45
  %v126 = vunpack.c.l.b16 %v46
  %v127 = vunpack.c.h.b16 %v46
  %v128 = vunpack.c.l.b16 %v47
  %v129 = vunpack.c.h.b16 %v47
  %v130 = vunpack.c.l.b16 %v48
  %v131 = vunpack.c.h.b16 %v48
  %v132 = vunpack.c.l.b16 %v49
  %v133 = vunpack.c.h.b16 %v49
  %v134 = vunpack.c.l.b16 %v50
  %v135 = vunpack.c.h.b16 %v50
  %v136 = vunpack.c.l.b16 %v51
  %v137 = vunpack.c.h.b16 %v51
  %v138 = vunpack.c.l.b16 %v52
  %v139 = vunpack.c.h.b16 %v52
  %v140 = vunpack.c.l.b16 %v53
  %v141 = vunpack.c.h.b16 %v53
  %v142 = vunpack.c.l.b16 %v54
  %v143 = vunpack.c.h.b16 %v54
  %v144 = vunpack.c.l.b16 %v55
  %v145 = vunpack.c.h.b16 %v55
  %v146 = vunpack.c.l.b16 %v56
  %v147 = vunpack.c.h.b16 %v56
  %v148 = vunpack.c.l.b16 %v57
  %v149 = vunpack.c.h.b16 %v57
  %v150 = vunpack.c.l.b16 %v58
  %v151 = vunpack.c.h.b16 %v58
  %v152 = vunpack.c.l.b16 %v59
  %v153 = vunpack.c.h.b16 %v59
  %v154 = vunpack.c.l.b16 %v60
  %v155 = vunpack.c.h.b16 %v60
  %v156 = vunpack.c.l.b16 %v61
  %v157 = vunpack.c.h.b16 %v61
  %v158 = vunpack.c.l.b16 %v62
  %v159 = vunpack.c.h.b16 %v62
  %v160 = vunpack.c.l.b16 %v63
  %v161 = vunpack.c.h.b16 %v63
  %v162 = vunpack.c.l.b16 %v64
  %v163 = vunpack.c.h.b16 %v64
  %v164 = vunpack.c.l.b16 %v65
  %v165 = vunpack.c.h.b16 %v65
  %v166 = vunpack.c.l.b16 %v66
  %v167 = vunpack.c.h.b16 %v66
  %v168 = vunpack.c.l.b16 %v67
  %v169 = vunpack.c.h.b16 %v67
  %v170 = vpack.c.b16 %v110, %v106
  %v171 = vpack.c.b16 %v111, %v107
  %v172 = vpack.c.b16 %v112, %v108
  %v173 = vpack.c.b16 %v113, %v109
  %v174 = vpack.c.b16 %v118, %v114
  %v175 = vpack.c.b16 %v119, %v115
  %v176 = vpack.c.b16 %v120, %v116
  %v177 = vpack.c.b16 %v121, %v117
  %v178 = vpack.c.b16 %v126, %v122
  %v179 = vpack.c.b16 %v127, %v123
  %v180 = vpack.c.b16 %v128, %v124
  %v181 = vpack.c.b16 %v129, %v125
  %v182 = vpack.c.b16 %v134, %v130
  %v183 = vpack.c.b16 %v135, %v131
  %v184 = vpack.c.b16 %v136, %v132
  %v185 = vpack.c.b16 %v137, %v133
  %v186 = vpack.c.b16 %v142, %v138
  %v187 = vpack.c.b16 %v143, %v139
  %v188 = vpack.c.b16 %v144, %v140
  %v189 = vpack.c.b16 %v145, %v141
  %v190 = vpack.c.b16 %v150, %v146
  %v191 = vpack.c.b16 %v151, %v147
  %v192 = vpack.c.b16 %v152, %v148
  %v193 = vpack.c.b16 %v153, %v149
  %v194 = vpack.c.b16 %v158, %v154
  %v195 = vpack.c.b16 %v159, %v155
  %v196 = vpack.c.b16 %v160, %v156
  %v197 = vpack.c.b16 %v161, %v157
  %v198 = vpack.c.b16 %v166, %v162
  %v199 = vpack.c.b16 %v167, %v163
  %v200 = vpack.c.b16 %v168, %v164
  %v201 = vpack.c.b16 %v169, %v165
  %234 = vmatprep.subr.bf16.mxu0 %v199
  %235 = vmatpush1.bf16.msra.mxu0 %v198
  %236 = vmatprep.subr.bf16.mxu0 %v195
  %237 = vmatpush1.bf16.msra.mxu0 %v194
  %238 = vmatprep.subr.bf16.mxu0 %v191
  %239 = vmatpush1.bf16.msra.mxu0 %v190
  %240 = vmatprep.subr.bf16.mxu0 %v187
  %241 = vmatpush1.bf16.msra.mxu0 %v186
  %242 = vmatprep.subr.bf16.mxu0 %v183
  %243 = vmatpush1.bf16.msra.mxu0 %v182
  %244 = vmatprep.subr.bf16.mxu0 %v179
  %245 = vmatpush1.bf16.msra.mxu0 %v178
  %246 = vmatprep.subr.bf16.mxu0 %v175
  %247 = vmatpush1.bf16.msra.mxu0 %v174
  %248 = vmatprep.subr.bf16.mxu0 %v171
  %249 = vmatpush1.bf16.msra.mxu0 %v170
  %250 = vmatprep.subr.bf16.mxu0 0
  %251 = vmatpush2.bf16.msra.mxu0 0
  %252 = vmatprep.subr.bf16.mxu0 0
  %253 = vmatpush2.bf16.msra.mxu0 0
  %254 = vmatprep.subr.bf16.mxu0 0
  %255 = vmatpush2.bf16.msra.mxu0 0
  %256 = vmatprep.subr.bf16.mxu0 0
  %257 = vmatpush2.bf16.msra.mxu0 0
  %258 = vmatprep.subr.bf16.mxu0 0
  %259 = vmatpush2.bf16.msra.mxu0 0
  %260 = vmatprep.subr.bf16.mxu0 0
  %261 = vmatpush2.bf16.msra.mxu0 0
  %262 = vmatprep.subr.bf16.mxu0 0
  %263 = vmatpush2.bf16.msra.mxu0 0
  %264 = vmatprep.subr.bf16.mxu0 0
  %265 = vmatpush2.bf16.msra.mxu0 0
  %266 = vmatprep.mubr.bf16.mxu0 0
  %267 = vmatmul.mubr.bf16.gmra.mxu0 %v72
  %v268 = vpop.f32.mrf.mxu0
  %v269 = vadd.f32 0.0, %v268
  %v270 = vpop.f32.mrf.mxu0
  %v271 = vadd.f32 0.0, %v270
  %v272 = vpop.f32.mrf.mxu0
  %v273 = vadd.f32 0.0, %v272
  %v274 = vpop.f32.mrf.mxu0
  %v275 = vadd.f32 0.0, %v274
  %276 = vdwg.mxu0
  %277 = vmatprep.subr.bf16.mxu0 %v201
  %278 = vmatpush1.bf16.msra.mxu0 %v200
  %279 = vmatprep.subr.bf16.mxu0 %v197
  %280 = vmatpush1.bf16.msra.mxu0 %v196
  %281 = vmatprep.subr.bf16.mxu0 %v193
  %282 = vmatpush1.bf16.msra.mxu0 %v192
  %283 = vmatprep.subr.bf16.mxu0 %v189
  %284 = vmatpush1.bf16.msra.mxu0 %v188
  %285 = vmatprep.subr.bf16.mxu0 %v185
  %286 = vmatpush1.bf16.msra.mxu0 %v184
  %287 = vmatprep.subr.bf16.mxu0 %v181
  %288 = vmatpush1.bf16.msra.mxu0 %v180
  %289 = vmatprep.subr.bf16.mxu0 %v177
  %290 = vmatpush1.bf16.msra.mxu0 %v176
  %291 = vmatprep.subr.bf16.mxu0 %v173
  %292 = vmatpush1.bf16.msra.mxu0 %v172
  %293 = vmatprep.subr.bf16.mxu0 0
  %294 = vmatpush2.bf16.msra.mxu0 0
  %295 = vmatprep.subr.bf16.mxu0 0
  %296 = vmatpush2.bf16.msra.mxu0 0
  %297 = vmatprep.subr.bf16.mxu0 0
  %298 = vmatpush2.bf16.msra.mxu0 0
  %299 = vmatprep.subr.bf16.mxu0 0
  %300 = vmatpush2.bf16.msra.mxu0 0
  %301 = vmatprep.subr.bf16.mxu0 0
  %302 = vmatpush2.bf16.msra.mxu0 0
  %303 = vmatprep.subr.bf16.mxu0 0
  %304 = vmatpush2.bf16.msra.mxu0 0
  %305 = vmatprep.subr.bf16.mxu0 0
  %306 = vmatpush2.bf16.msra.mxu0 0
  %307 = vmatprep.subr.bf16.mxu0 0
  %308 = vmatpush2.bf16.msra.mxu0 0
  %309 = vmatprep.mubr.bf16.mxu0 0
  %310 = vmatmul.mubr.bf16.gmra.mxu0 %v72
  %v311 = vpop.f32.mrf.mxu0
  %v312 = vadd.f32 0.0, %v311
  %v313 = vpop.f32.mrf.mxu0
  %v314 = vadd.f32 0.0, %v313
  %v315 = vpop.f32.mrf.mxu0
  %v316 = vadd.f32 0.0, %v315
  %v317 = vpop.f32.mrf.mxu0
  %v318 = vadd.f32 0.0, %v317
  %319 = vdwg.mxu0
  %v320 = vadd.f32 %v26, %v269
  %v321 = vadd.f32 %v27, %v271
  %v322 = vadd.f32 %v28, %v312
  %v323 = vadd.f32 %v29, %v314
  %v324 = vadd.f32 %v30, %v273
  %v325 = vadd.f32 %v31, %v275
  %v326 = vadd.f32 %v32, %v316
  %v327 = vadd.f32 %v33, %v318
  %328 = vst [vmem:[#allocation2] sm:$0xff] %v320
  %329 = vst [vmem:[#allocation2 + $0x8] sm:$0xff] %v321
  %330 = vst [vmem:[#allocation2 + $0x10] sm:$0xff] %v322
  %331 = vst [vmem:[#allocation2 + $0x18] sm:$0xff] %v323
  %332 = vst [vmem:[#allocation2 + $0x20] sm:$0xff] %v324
  %333 = vst [vmem:[#allocation2 + $0x28] sm:$0xff] %v325
  %334 = vst [vmem:[#allocation2 + $0x30] sm:$0xff] %v326
  %335 = vst [vmem:[#allocation2 + $0x38] sm:$0xff] %v327
  // Predicated region
  $region14: #{encoder_forward.2} parent=0 // pred_check
    %p336 = pneg %p14
  $region15: #{encoder_forward.2} parent=0 // pred_check_branch
    %338 = sbr.rel (%p336) target = $region17
  $region16: #{encoder_forward.2} parent=0 // pred_region
    %v339 = vld [vmem:[#allocation2] sm:$0xff]
    %v340 = vld [vmem:[#allocation2 + $0x8] sm:$0xff]
    %v341 = vld [vmem:[#allocation2 + $0x10] sm:$0xff]
    %v342 = vld [vmem:[#allocation2 + $0x18] sm:$0xff]
    %v343 = vld [vmem:[#allocation2 + $0x20] sm:$0xff]
    %v344 = vld [vmem:[#allocation2 + $0x28] sm:$0xff]
    %v345 = vld [vmem:[#allocation2 + $0x30] sm:$0xff]
    %v346 = vld [vmem:[#allocation2 + $0x38] sm:$0xff]
    %v347 = vpack.c.bf16 %v343, %v339
    %v348 = vpack.c.bf16 %v344, %v340
    %v349 = vpack.c.bf16 %v345, %v341
    %v350 = vpack.c.bf16 %v346, %v342
    %v355 = vunpack.c.l.b16 %v347
    %v356 = vunpack.c.l.b16 %v348
    %v357 = vunpack.c.l.b16 %v349
    %v358 = vunpack.c.l.b16 %v350
    %v359 = vunpack.c.h.b16 %v347
    %v360 = vunpack.c.h.b16 %v348
    %v361 = vunpack.c.h.b16 %v349
    %v362 = vunpack.c.h.b16 %v350
    %v363 = vpack.c.b16 %v356, %v355
    %v364 = vpack.c.b16 %v358, %v357
    %v365 = vpack.c.b16 %v360, %v359
    %v366 = vpack.c.b16 %v362, %v361
    %371 = vst [vmem:[%s2] sm:$0xff] %v363
    %372 = vst [vmem:[%s2 + $0x8] sm:$0xff] %v364
    %373 = vst [vmem:[%s2 + $0x10] sm:$0xff] %v365
    %374 = vst [vmem:[%s2 + $0x18] sm:$0xff] %v366
    %v375 = vadd.f32 %v339, %v340
    %v376 = vadd.f32 %v375, %v341
    %v377 = vadd.f32 %v376, %v342
    %378 = vadd.xlane.f32.xlu0 %v377
    %v379 = vpop.xlane.xlu0 %378
    %v380 = vadd.f32 %v343, %v344
    %v381 = vadd.f32 %v380, %v345
    %v382 = vadd.f32 %v381, %v346
    %383 = vadd.xlane.f32.xlu0 %v382
    %v384 = vpop.xlane.xlu0 %383
    %v385 = vmul.f32 %v339, %v339
    %v386 = vmul.f32 %v340, %v340
    %v387 = vmul.f32 %v341, %v341
    %v388 = vmul.f32 %v342, %v342
    %v389 = vmul.f32 %v343, %v343
    %v390 = vmul.f32 %v344, %v344
    %v391 = vmul.f32 %v345, %v345
    %v392 = vmul.f32 %v346, %v346
    %v393 = vadd.f32 %v385, %v386
    %v394 = vadd.f32 %v393, %v387
    %v395 = vadd.f32 %v394, %v388
    %396 = vadd.xlane.f32.xlu0 %v395
    %v397 = vpop.xlane.xlu0 %396
    %v398 = vadd.f32 %v389, %v390
    %v399 = vadd.f32 %v398, %v391
    %v400 = vadd.f32 %v399, %v392
    %401 = vadd.xlane.f32.xlu0 %v400
    %v402 = vpop.xlane.xlu0 %401
    %v403 = vlaneseq
    %v404 = vand.u32 %v403, 127
    %vm405 = vcmp.eq.s32.totalorder %v404, 0
    %vm406 = vcmp.eq.s32.totalorder %v404, 1
    %v407 = vsel %vm406, %v397, 0.0
    %v408 = vsel %vm406, %v402, 0.0
    %v409 = vsel %vm405, %v379, %v407
    %v410 = vsel %vm405, %v384, %v408
    %411 = vst [vmem:[%s3] sm:$0xff] %v409
    %412 = vst [vmem:[%s3 + $0x8] sm:$0xff] %v410
  $region17: #{encoder_forward.2} parent=0 // pred_fallthru
    _
  // Predicated region
  $region18: #{encoder_forward.2} parent=0 // pred_check
    _
  $region19: #{encoder_forward.2} parent=0 // pred_check_branch
    %414 = sbr.rel (0) target = $region21
  $region20: #{encoder_forward.2} parent=0 // pred_region
    _
  $region21: #{encoder_forward.2} parent=0 // pred_fallthru
    _
  // Predicated region
  $region22: #{encoder_forward.2} parent=0 // pred_check
    _
  $region23: #{encoder_forward.2} parent=0 // pred_check_branch
    %416 = sbr.rel (0) target = $region25
  $region24: #{encoder_forward.2} parent=0 // pred_region
    _
  $region25: #{encoder_forward.2} parent=0 // pred_fallthru
    _
  // Predicated region
  $region26: #{encoder_forward.2} parent=0 // pred_check
    _
  $region27: #{encoder_forward.2} parent=0 // pred_check_branch
    %418 = sbr.rel (0) target = $region29
  $region28: #{encoder_forward.2} parent=0 // pred_region
    _
  $region29: #{encoder_forward.2} parent=0 // pred_fallthru
    _
  // Predicated region
  $region30: #{encoder_forward.2} parent=0 // pred_check
    _
  $region31: #{encoder_forward.2} parent=0 // pred_check_branch
    %420 = sbr.rel (0) target = $region33
  $region32: #{encoder_forward.2} parent=0 // pred_region
    _
  $region33: #{encoder_forward.2} parent=0 // pred_fallthru
    _

</llo_original>
